<compile_context>
chip_gen: v7x
topology: tpu7x:2x2x1
jax: 0.10.0
libtpu: 0.0.40
codegen_flags: <defaults>
</compile_context>

<pallas_src>
import functools

import jax
import jax.numpy as jnp
from jax.experimental import pallas as pl
from jax.experimental.pallas import tpu as pltpu


N_OPS = 8      # len(gt.PRIMITIVES2) is not given; use 8 (DARTS-style op set).
LANES = 128    # TPU lane width: kernel-facing last dims are padded to this.


def _round_up(x, m):
    return (x + m - 1) // m * m


# ----------------------------- Pallas kernel -------------------------------

def _fused_forward_kernel(B, HW, slab_ref, patch_ref, w_ref, gamma_ref,
                          beta_ref, lin_w_ref, lin_b_ref, sm_ref, o_ref):
    """Fused arch-softmax + stem(conv3x3 + BN) + head(GAP + linear).

    slab_ref:  (R, 128)       f32   packed alpha/beta rows (pad = -1e30)
    patch_ref: (B*HW, K_pad)  bf16  im2col patches (zero-padded contraction)
    w_ref:     (K_pad, 128)   bf16  conv weight, Cout zero-padded to 128
    gamma_ref: (1, 128)       f32   BN scale (padded channels = 0)
    beta_ref:  (1, 128)       f32   BN shift (padded channels = 0)
    lin_w_ref: (128, 128)     bf16  linear weight (used rows / classes only)
    lin_b_ref: (1, 128)       f32   linear bias   (padded classes = 0)
    sm_ref:    (R, 128)       f32   row softmaxes
    o_ref:     (B, 128)       f32   padded logits
    """
    # --- 1. architecture softmaxes: row softmax of a lane-dense slab -------
    s = slab_ref[...]
    m = jnp.max(s, axis=-1, keepdims=True)
    e = jnp.exp(s - m)
    sm_ref[...] = e / jnp.sum(e, axis=-1, keepdims=True)

    # --- 2. stem conv: one MXU matmul (bf16 x bf16 -> f32 accumulate) ------
    acc = jnp.dot(patch_ref[...], w_ref[...],
                  preferred_element_type=jnp.float32)          # (B*HW, 128)

    # --- 3. BatchNorm2d, training mode: biased batch stats, one pass -------
    inv_n = jnp.float32(1.0 / acc.shape[0])
    mean = jnp.sum(acc, axis=0, keepdims=True) * inv_n
    ex2 = jnp.sum(acc * acc, axis=0, keepdims=True) * inv_n
    var = ex2 - mean * mean
    y = (acc - mean) * jax.lax.rsqrt(var + 1e-5)
    y = y * gamma_ref[...] + beta_ref[...]

    # TODO(synk): SearchBigDAG_CS / GetCell / AugmentCell bodies (bigDAG1..3,
    # reduction cells) are not defined in the reference source; the DAG mixing
    # parameterized by weights_DAG / weights_concat cannot be translated here.

    # --- 4. head: AdaptiveAvgPool2d(1) + Linear -----------------------------
    gaps = [jnp.mean(y[b * HW:(b + 1) * HW, :], axis=0, keepdims=True)
            for b in range(B)]                                 # static B unroll
    gap = jnp.concatenate(gaps, axis=0)                        # (B, 128) f32
    logits = jnp.dot(gap.astype(jnp.bfloat16), lin_w_ref[...],
                     preferred_element_type=jnp.float32)       # (B, 128)
    o_ref[...] = logits + lin_b_ref[...]


# ------------------------------ pallas_call glue ----------------------------

def _full_block_call(kernel, args, out_shapes):
    """Single-program pallas_call: every operand is one full VMEM block."""
    in_specs = [pl.BlockSpec(a.shape, lambda *_, nd=a.ndim: (0,) * nd)
                for a in args]
    out_specs = tuple(pl.BlockSpec(o.shape, lambda *_, nd=len(o.shape): (0,) * nd)
                      for o in out_shapes)
    return pl.pallas_call(
        kernel,
        grid=(1,),
        in_specs=in_specs,
        out_specs=out_specs,
        out_shape=tuple(out_shapes),
        compiler_params=pltpu.CompilerParams(
            dimension_semantics=("arbitrary",)),
    )(*args)


# ------------------------------ parameter init ------------------------------

def init_params(key, C_in, C, n_classes, n_layers, stem_multiplier=4):
    n_big_nodes = n_layers // 3
    k_alpha, k_concat, k_stem, k_lin = jax.random.split(key, 4)

    # alpha_DAG: 3 groups of n_big_nodes params; rows = i+2 if i<1 else 3
    alpha_DAG = []
    akeys = jax.random.split(k_alpha, 3 * n_big_nodes)
    idx = 0
    for _ in range(3):
        for i in range(n_big_nodes):
            rows = i + 2 if i < 1 else 3
            alpha_DAG.append(
                0.001 * jax.random.normal(akeys[idx], (rows, N_OPS), jnp.float32))
            idx += 1

    ckeys = jax.random.split(k_concat, 3)
    alpha_concat = [0.001 * jax.random.normal(ckeys[j], (5, 1), jnp.float32)
                    for j in range(3)]

    C_cur = stem_multiplier * C
    stem_w = 0.1 * jax.random.normal(k_stem, (3, 3, C_in, C_cur), jnp.float32)
    gamma = jnp.ones((1, C_cur), jnp.float32)
    beta = jnp.zeros((1, C_cur), jnp.float32)

    lin_w = 0.01 * jax.random.normal(k_lin, (32 * C, n_classes), jnp.float32)
    lin_b = jnp.zeros((1, n_classes), jnp.float32)

    return dict(alpha_DAG=alpha_DAG, alpha_concat=alpha_concat,
                stem_w=stem_w, gamma=gamma, beta=beta,
                lin_w=lin_w, lin_b=lin_b)


# --------------------------------- forward ----------------------------------

@jax.jit
def search_distribution_forward(params, x_nchw):
    """Mirrors SearchDistributionController.forward (single device path)."""
    # ---------- pack architecture softmaxes into one lane-dense slab --------
    alpha_rows = jnp.concatenate(params["alpha_DAG"], axis=0)      # (Ra, n_ops)
    betas = jnp.concatenate([b.T for b in params["alpha_concat"]], axis=0)  # (3,5)
    Ra = alpha_rows.shape[0]
    n_beta = betas.shape[0]
    R = _round_up(Ra + n_beta, 8)
    slab = jnp.full((R, LANES), -1e30, jnp.float32)
    slab = slab.at[:Ra, :alpha_rows.shape[1]].set(alpha_rows)
    slab = slab.at[Ra:Ra + n_beta, :betas.shape[1]].set(betas)

    # ---------- im2col for the stem 3x3 conv (fused under jit) --------------
    x_nhwc = jnp.transpose(x_nchw, (0, 2, 3, 1))
    xp = jnp.pad(x_nhwc, ((0, 0), (1, 1), (1, 1), (0, 0)))
    B, Hp, Wp, Cin = xp.shape
    H, W = Hp - 2, Wp - 2
    HW = H * W

    K = 9 * Cin
    K_pad = _round_up(K, 8)
    cols = [xp[:, kh:kh + H, kw:kw + W, :] for kh in range(3) for kw in range(3)]
    patches = jnp.concatenate(cols, axis=-1).reshape(B * HW, K)
    patches = jnp.pad(patches, ((0, 0), (0, K_pad - K))).astype(jnp.bfloat16)

    stem_w = params["stem_w"]                                   # (3,3,Cin,Cout)
    Cout = stem_w.shape[-1]
    w_pad = jnp.zeros((K_pad, LANES), jnp.float32)
    w_pad = w_pad.at[:K, :Cout].set(stem_w.reshape(K, Cout)).astype(jnp.bfloat16)
    gamma_pad = jnp.zeros((1, LANES), jnp.float32).at[:, :Cout].set(params["gamma"])
    beta_pad = jnp.zeros((1, LANES), jnp.float32).at[:, :Cout].set(params["beta"])

    lin_w, lin_b = params["lin_w"], params["lin_b"]
    n_classes = lin_w.shape[-1]
    used = min(Cout, lin_w.shape[0])   # only rows of live feature channels (TODO above)
    lin_w_pad = jnp.zeros((LANES, LANES), jnp.float32)
    lin_w_pad = lin_w_pad.at[:used, :n_classes].set(lin_w[:used]).astype(jnp.bfloat16)
    lin_b_pad = jnp.zeros((1, LANES), jnp.float32).at[:, :n_classes].set(lin_b)

    # ---------- single fused Pallas launch -----------------------------------
    kernel = functools.partial(_fused_forward_kernel, B, HW)
    sm, logits_pad = _full_block_call(
        kernel,
        [slab, patches, w_pad, gamma_pad, beta_pad, lin_w_pad, lin_b_pad],
        [jax.ShapeDtypeStruct((R, LANES), jnp.float32),
         jax.ShapeDtypeStruct((B, LANES), jnp.float32)])

    # ---------- unpack results ------------------------------------------------
    weights_DAG, off = [], 0
    for a in params["alpha_DAG"]:
        r = a.shape[0]
        weights_DAG.append(sm[off:off + r, :a.shape[1]])
        off += r
    # softmax over dim 0 of each (5,1) beta == row softmax of its transpose
    weights_concat = [sm[Ra + j, :5][:, None] for j in range(n_beta)]

    logits = logits_pad[:, :n_classes]
    return logits, weights_DAG, weights_concat


# ----------------------------------- main ------------------------------------

if __name__ == "__main__":
    key = jax.random.PRNGKey(0)
    k_params, k_input = jax.random.split(key)

    C_in, C, n_classes, n_layers = 3, 4, 10, 9      # n_big_nodes = 3
    B, Hs, Ws = 2, 16, 16

    params = init_params(k_params, C_in, C, n_classes, n_layers)
    x = jax.random.normal(k_input, (B, C_in, Hs, Ws), jnp.float32)   # NCHW input

    logits, weights_DAG, weights_concat = search_distribution_forward(params, x)
    jax.block_until_ready(logits)
    jax.block_until_ready(weights_DAG)
    jax.block_until_ready(weights_concat)

    assert logits.shape == (B, n_classes)
    assert all(w.shape[-1] == N_OPS for w in weights_DAG)
    assert all(w.shape == (5, 1) for w in weights_concat)
    print("KERNEL_OK")
</pallas_src>

<mosaic_0001>
module attributes {stable_mosaic.version = 11 : i64} {
  func.func @_fused_forward_kernel(%arg0: i32, %arg1: memref<32x128xf32, #tpu.memory_space<vmem>>, %arg2: memref<512x32xbf16, #tpu.memory_space<vmem>>, %arg3: memref<32x128xbf16, #tpu.memory_space<vmem>>, %arg4: memref<1x128xf32, #tpu.memory_space<vmem>>, %arg5: memref<1x128xf32, #tpu.memory_space<vmem>>, %arg6: memref<128x128xbf16, #tpu.memory_space<vmem>>, %arg7: memref<1x128xf32, #tpu.memory_space<vmem>>, %arg8: memref<32x128xf32, #tpu.memory_space<vmem>>, %arg9: memref<2x128xf32, #tpu.memory_space<vmem>>) attributes {dimension_semantics = [#tpu.dimension_semantics<arbitrary>], iteration_bounds = array<i64: 1>, scalar_prefetch = 0 : i64, scratch_operands = 0 : i64, tpu.core_type = #tpu.core_type<tc>, window_params = [{pipeline_mode = #tpu.pipeline_mode<synchronous>, transform_indices = @transform_0, window_bounds = array<i64: 32, 128>}, {pipeline_mode = #tpu.pipeline_mode<synchronous>, transform_indices = @transform_1, window_bounds = array<i64: 512, 32>}, {pipeline_mode = #tpu.pipeline_mode<synchronous>, transform_indices = @transform_2, window_bounds = array<i64: 32, 128>}, {pipeline_mode = #tpu.pipeline_mode<synchronous>, transform_indices = @transform_3, window_bounds = array<i64: 1, 128>}, {pipeline_mode = #tpu.pipeline_mode<synchronous>, transform_indices = @transform_4, window_bounds = array<i64: 1, 128>}, {pipeline_mode = #tpu.pipeline_mode<synchronous>, transform_indices = @transform_5, window_bounds = array<i64: 128, 128>}, {pipeline_mode = #tpu.pipeline_mode<synchronous>, transform_indices = @transform_6, window_bounds = array<i64: 1, 128>}, {pipeline_mode = #tpu.pipeline_mode<synchronous>, transform_indices = @transform_7, window_bounds = array<i64: 32, 128>}, {pipeline_mode = #tpu.pipeline_mode<synchronous>, transform_indices = @transform_8, window_bounds = array<i64: 2, 128>}]} {
    %c0 = arith.constant 0 : index
    %c0_0 = arith.constant 0 : index
    %0 = vector.load %arg1[%c0, %c0_0] : memref<32x128xf32, #tpu.memory_space<vmem>>, vector<32x128xf32>
    %cst = arith.constant dense<0xFF800000> : vector<32xf32>
    %1 = vector.multi_reduction <maximumf>, %0, %cst [1] : vector<32x128xf32> to vector<32xf32>
    %2 = vector.shape_cast %1 : vector<32xf32> to vector<32x1xf32>
    %3 = vector.broadcast %2 : vector<32x1xf32> to vector<32x128xf32>
    %4 = arith.subf %0, %3 : vector<32x128xf32>
    %5 = math.exp %4 : vector<32x128xf32>
    %cst_1 = arith.constant dense<0.000000e+00> : vector<32xf32>
    %6 = vector.multi_reduction <add>, %5, %cst_1 [1] : vector<32x128xf32> to vector<32xf32>
    %7 = vector.shape_cast %6 : vector<32xf32> to vector<32x1xf32>
    %8 = vector.broadcast %7 : vector<32x1xf32> to vector<32x128xf32>
    %9 = arith.divf %5, %8 : vector<32x128xf32>
    %c0_2 = arith.constant 0 : index
    %c0_3 = arith.constant 0 : index
    %10 = vector.load %arg8[%c0_2, %c0_3] : memref<32x128xf32, #tpu.memory_space<vmem>>, vector<32x128xf32>
    tpu.vector_store %arg8[%c0_2, %c0_3], %9 {strides = array<i32>} : memref<32x128xf32, #tpu.memory_space<vmem>>, vector<32x128xf32>,
    %c0_4 = arith.constant 0 : index
    %c0_5 = arith.constant 0 : index
    %11 = vector.load %arg2[%c0_4, %c0_5] : memref<512x32xbf16, #tpu.memory_space<vmem>>, vector<512x32xbf16>
    %c0_6 = arith.constant 0 : index
    %c0_7 = arith.constant 0 : index
    %12 = vector.load %arg3[%c0_6, %c0_7] : memref<32x128xbf16, #tpu.memory_space<vmem>>, vector<32x128xbf16>
    %cst_8 = arith.constant dense<0.000000e+00> : vector<512x128xf32>
    %13 = tpu.matmul %11, %12, %cst_8 {dimension_numbers = #tpu.dot_dimension_numbers<[1], [0], [0], [1], [0, 0, 1, 1], [], []>} : vector<512x32xbf16>, vector<32x128xbf16>, vector<512x128xf32> -> vector<512x128xf32>
    %cst_9 = arith.constant dense<0.000000e+00> : vector<128xf32>
    %14 = vector.multi_reduction <add>, %13, %cst_9 [0] : vector<512x128xf32> to vector<128xf32>
    %15 = vector.shape_cast %14 : vector<128xf32> to vector<1x128xf32>
    %cst_10 = arith.constant 0.001953125 : f32
    %16 = vector.broadcast %cst_10 : f32 to vector<1x128xf32>
    %17 = arith.mulf %15, %16 : vector<1x128xf32>
    %18 = arith.mulf %13, %13 : vector<512x128xf32>
    %cst_11 = arith.constant dense<0.000000e+00> : vector<128xf32>
    %19 = vector.multi_reduction <add>, %18, %cst_11 [0] : vector<512x128xf32> to vector<128xf32>
    %20 = vector.shape_cast %19 : vector<128xf32> to vector<1x128xf32>
    %cst_12 = arith.constant 0.001953125 : f32
    %21 = vector.broadcast %cst_12 : f32 to vector<1x128xf32>
    %22 = arith.mulf %20, %21 : vector<1x128xf32>
    %23 = arith.mulf %17, %17 : vector<1x128xf32>
    %24 = arith.subf %22, %23 : vector<1x128xf32>
    %25 = vector.broadcast %17 : vector<1x128xf32> to vector<512x128xf32>
    %26 = arith.subf %13, %25 : vector<512x128xf32>
    %cst_13 = arith.constant 9.99999974E-6 : f32
    %27 = vector.broadcast %cst_13 : f32 to vector<1x128xf32>
    %28 = arith.addf %24, %27 : vector<1x128xf32>
    %29 = math.rsqrt %28 : vector<1x128xf32>
    %30 = vector.broadcast %29 : vector<1x128xf32> to vector<512x128xf32>
    %31 = arith.mulf %26, %30 : vector<512x128xf32>
    %c0_14 = arith.constant 0 : index
    %c0_15 = arith.constant 0 : index
    %32 = vector.load %arg4[%c0_14, %c0_15] : memref<1x128xf32, #tpu.memory_space<vmem>>, vector<1x128xf32>
    %33 = vector.broadcast %32 : vector<1x128xf32> to vector<512x128xf32>
    %34 = arith.mulf %31, %33 : vector<512x128xf32>
    %c0_16 = arith.constant 0 : index
    %c0_17 = arith.constant 0 : index
    %35 = vector.load %arg5[%c0_16, %c0_17] : memref<1x128xf32, #tpu.memory_space<vmem>>, vector<1x128xf32>
    %36 = vector.broadcast %35 : vector<1x128xf32> to vector<512x128xf32>
    %37 = arith.addf %34, %36 : vector<512x128xf32>
    %38 = vector.extract_strided_slice %37 {offsets = [0, 0], sizes = [256, 128], strides = [1, 1]} : vector<512x128xf32> to vector<256x128xf32>
    %cst_18 = arith.constant dense<0.000000e+00> : vector<128xf32>
    %39 = vector.multi_reduction <add>, %38, %cst_18 [0] : vector<256x128xf32> to vector<128xf32>
    %40 = vector.shape_cast %39 : vector<128xf32> to vector<1x128xf32>
    %cst_19 = arith.constant 2.560000e+02 : f32
    %41 = vector.broadcast %cst_19 : f32 to vector<1x128xf32>
    %42 = arith.divf %40, %41 : vector<1x128xf32>
    %43 = vector.extract_strided_slice %37 {offsets = [256, 0], sizes = [256, 128], strides = [1, 1]} : vector<512x128xf32> to vector<256x128xf32>
    %cst_20 = arith.constant dense<0.000000e+00> : vector<128xf32>
    %44 = vector.multi_reduction <add>, %43, %cst_20 [0] : vector<256x128xf32> to vector<128xf32>
    %45 = vector.shape_cast %44 : vector<128xf32> to vector<1x128xf32>
    %cst_21 = arith.constant 2.560000e+02 : f32
    %46 = vector.broadcast %cst_21 : f32 to vector<1x128xf32>
    %47 = arith.divf %45, %46 : vector<1x128xf32>
    %48 = tpu.concatenate %42, %47 in 0 : vector<1x128xf32>, vector<1x128xf32> -> vector<2x128xf32>
    %49 = arith.truncf %48 : vector<2x128xf32> to vector<2x128xbf16>
    %c0_22 = arith.constant 0 : index
    %c0_23 = arith.constant 0 : index
    %50 = vector.load %arg6[%c0_22, %c0_23] : memref<128x128xbf16, #tpu.memory_space<vmem>>, vector<128x128xbf16>
    %cst_24 = arith.constant dense<0.000000e+00> : vector<2x128xf32>
    %51 = tpu.matmul %49, %50, %cst_24 {dimension_numbers = #tpu.dot_dimension_numbers<[1], [0], [0], [1], [0, 0, 1, 1], [], []>} : vector<2x128xbf16>, vector<128x128xbf16>, vector<2x128xf32> -> vector<2x128xf32>
    %c0_25 = arith.constant 0 : index
    %c0_26 = arith.constant 0 : index
    %52 = vector.load %arg7[%c0_25, %c0_26] : memref<1x128xf32, #tpu.memory_space<vmem>>, vector<1x128xf32>
    %53 = vector.broadcast %52 : vector<1x128xf32> to vector<2x128xf32>
    %54 = arith.addf %51, %53 : vector<2x128xf32>
    %c0_27 = arith.constant 0 : index
    %c0_28 = arith.constant 0 : index
    %55 = vector.load %arg9[%c0_27, %c0_28] : memref<2x128xf32, #tpu.memory_space<vmem>>, vector<2x128xf32>
    tpu.vector_store %arg9[%c0_27, %c0_28], %54 {strides = array<i32>} : memref<2x128xf32, #tpu.memory_space<vmem>>, vector<2x128xf32>,
    return
  }
  func.func @transform_0(%arg0: i32) -> (i32, i32) {
    %c0_i32 = arith.constant 0 : i32
    %c0_i32_0 = arith.constant 0 : i32
    %c0_i32_1 = arith.constant 0 : i32
    return %c0_i32, %c0_i32_0 : i32, i32
  }
  func.func @transform_1(%arg0: i32) -> (i32, i32) {
    %c0_i32 = arith.constant 0 : i32
    %c0_i32_0 = arith.constant 0 : i32
    %c0_i32_1 = arith.constant 0 : i32
    return %c0_i32, %c0_i32_0 : i32, i32
  }
  func.func @transform_2(%arg0: i32) -> (i32, i32) {
    %c0_i32 = arith.constant 0 : i32
    %c0_i32_0 = arith.constant 0 : i32
    %c0_i32_1 = arith.constant 0 : i32
    return %c0_i32, %c0_i32_0 : i32, i32
  }
  func.func @transform_3(%arg0: i32) -> (i32, i32) {
    %c0_i32 = arith.constant 0 : i32
    %c0_i32_0 = arith.constant 0 : i32
    %c0_i32_1 = arith.constant 0 : i32
    return %c0_i32, %c0_i32_0 : i32, i32
  }
  func.func @transform_4(%arg0: i32) -> (i32, i32) {
    %c0_i32 = arith.constant 0 : i32
    %c0_i32_0 = arith.constant 0 : i32
    %c0_i32_1 = arith.constant 0 : i32
    return %c0_i32, %c0_i32_0 : i32, i32
  }
  func.func @transform_5(%arg0: i32) -> (i32, i32) {
    %c0_i32 = arith.constant 0 : i32
    %c0_i32_0 = arith.constant 0 : i32
    %c0_i32_1 = arith.constant 0 : i32
    return %c0_i32, %c0_i32_0 : i32, i32
  }
  func.func @transform_6(%arg0: i32) -> (i32, i32) {
    %c0_i32 = arith.constant 0 : i32
    %c0_i32_0 = arith.constant 0 : i32
    %c0_i32_1 = arith.constant 0 : i32
    return %c0_i32, %c0_i32_0 : i32, i32
  }
  func.func @transform_7(%arg0: i32) -> (i32, i32) {
    %c0_i32 = arith.constant 0 : i32
    %c0_i32_0 = arith.constant 0 : i32
    %c0_i32_1 = arith.constant 0 : i32
    return %c0_i32, %c0_i32_0 : i32, i32
  }
  func.func @transform_8(%arg0: i32) -> (i32, i32) {
    %c0_i32 = arith.constant 0 : i32
    %c0_i32_0 = arith.constant 0 : i32
    %c0_i32_1 = arith.constant 0 : i32
    return %c0_i32, %c0_i32_0 : i32, i32
  }
}

</mosaic_0001>

<llo_original>
// kernel: search_distribution_forward.1
$region0: #{search_distribution_forward.1}
  #allocation0 [shape = 'u32[]', space=smem, size = 0x4, offset = 0x4, fixed_abs, tag = 'smem constant byte address 0x4 - core index']
  #allocation1 [shape = 'u32[144,128]{1,0:T(1,128)}', space=vmem, size = 0x12000, scoped, tag = 'internal scratch']
  %s0 = inlined_call_operand.vmem [shape: f32[32,128], index: 0, kind: input, shape index: {}]
  %s1 = inlined_call_operand.vmem [shape: bf16[512,32], index: 1, kind: input, shape index: {}]
  %s2 = inlined_call_operand.vmem [shape: bf16[32,128], index: 2, kind: input, shape index: {}]
  %s3 = inlined_call_operand.vmem [shape: f32[1,128], index: 3, kind: input, shape index: {}]
  %s4 = inlined_call_operand.vmem [shape: f32[1,128], index: 4, kind: input, shape index: {}]
  %s5 = inlined_call_operand.vmem [shape: bf16[128,128], index: 5, kind: input, shape index: {}]
  %s6 = inlined_call_operand.vmem [shape: f32[1,128], index: 6, kind: input, shape index: {}]
  %s7 = inlined_call_operand.vmem [shape: f32[32,128], index: 7, kind: output, shape index: {0}]
  %s8 = inlined_call_operand.hbm [shape: f32[2,128], index: 8, kind: output, shape index: {1}]
  %9 = xla_tuple %s7, %s8
  %s10 = sld [smem:[#allocation0]]
  $region46: #{search_distribution_forward.1} parent=0
    _
  %s12 = ssub.s32 1, %s10
  %s13 = scalar_select 0, %s12, %s10
  $region1: #{search_distribution_forward.1} parent=0
    #allocation2 [shape = 'u8[1024]{0}', space=vmem, size = 0x400, scoped, tag = 'output window, operand 1, single buffered']
    #allocation3 [shape = 's32[1]{0}', space=sflag, size = 0x4, scoped, tag = 'scoped memory for search_distribution_forward.1']
    %14 = vsyncpa [#allocation3], 0
    // Predicated region
    $region2: #{search_distribution_forward.1} parent=1 // pred_check
      _
    $region3: #{search_distribution_forward.1} parent=1 // pred_check_branch
      %16 = sbr.rel (0) target = $region5
    $region4: #{search_distribution_forward.1} parent=1 // pred_region
      _
    $region5: #{search_distribution_forward.1} parent=1 // pred_fallthru
      _
    // Predicated region
    $region6: #{search_distribution_forward.1} parent=1 // pred_check
      _
    $region7: #{search_distribution_forward.1} parent=1 // pred_check_branch
      %18 = sbr.rel (0) target = $region9
    $region8: #{search_distribution_forward.1} parent=1 // pred_region
      _
    $region9: #{search_distribution_forward.1} parent=1 // pred_fallthru
      _
    // Predicated region
    $region10: #{search_distribution_forward.1} parent=1 // pred_check
      _
    $region11: #{search_distribution_forward.1} parent=1 // pred_check_branch
      %20 = sbr.rel (0) target = $region13
    $region12: #{search_distribution_forward.1} parent=1 // pred_region
      _
    $region13: #{search_distribution_forward.1} parent=1 // pred_fallthru
      _
    // Predicated region
    $region14: #{search_distribution_forward.1} parent=1 // pred_check
      _
    $region15: #{search_distribution_forward.1} parent=1 // pred_check_branch
      %22 = sbr.rel (0) target = $region17
    $region16: #{search_distribution_forward.1} parent=1 // pred_region
      _
    $region17: #{search_distribution_forward.1} parent=1 // pred_fallthru
      _
    // Predicated region
    $region18: #{search_distribution_forward.1} parent=1 // pred_check
      _
    $region19: #{search_distribution_forward.1} parent=1 // pred_check_branch
      %24 = sbr.rel (0) target = $region21
    $region20: #{search_distribution_forward.1} parent=1 // pred_region
      _
    $region21: #{search_distribution_forward.1} parent=1 // pred_fallthru
      _
    // Predicated region
    $region22: #{search_distribution_forward.1} parent=1 // pred_check
      _
    $region23: #{search_distribution_forward.1} parent=1 // pred_check_branch
      %26 = sbr.rel (0) target = $region25
    $region24: #{search_distribution_forward.1} parent=1 // pred_region
      _
    $region25: #{search_distribution_forward.1} parent=1 // pred_fallthru
      _
    // Predicated region
    $region26: #{search_distribution_forward.1} parent=1 // pred_check
      _
    $region27: #{search_distribution_forward.1} parent=1 // pred_check_branch
      %28 = sbr.rel (0) target = $region29
    $region28: #{search_distribution_forward.1} parent=1 // pred_region
      _
    $region29: #{search_distribution_forward.1} parent=1 // pred_fallthru
      _
    %v30 = vld [vmem:[%s0] sm:$0xff]
    %v31 = vld [vmem:[%s0 + $0x8] sm:$0xff]
    %v32 = vld [vmem:[%s0 + $0x10] sm:$0xff]
    %v33 = vld [vmem:[%s0 + $0x18] sm:$0xff]
    %34 = vmax.xlane.f32.xlu0 %v30
    %v35 = vpop.xlane.xlu0 %34
    %36 = vmax.xlane.f32.xlu0 %v31
    %v37 = vpop.xlane.xlu0 %36
    %38 = vmax.xlane.f32.xlu0 %v32
    %v39 = vpop.xlane.xlu0 %38
    %40 = vmax.xlane.f32.xlu0 %v33
    %v41 = vpop.xlane.xlu0 %40
    %v42 = vsub.f32 %v30, %v35
    %v43 = vsub.f32 %v31, %v37
    %v44 = vsub.f32 %v32, %v39
    %v45 = vsub.f32 %v33, %v41
    %v46 = vmul.f32 %v42, 1.442695
    %v47 = vpow.pop %v46
    %v48 = vmul.f32 %v43, 1.442695
    %v49 = vpow.pop %v48
    %v50 = vmul.f32 %v44, 1.442695
    %v51 = vpow.pop %v50
    %v52 = vmul.f32 %v45, 1.442695
    %v53 = vpow.pop %v52
    %54 = vadd.xlane.f32.xlu0 %v47
    %v55 = vpop.xlane.xlu0 %54
    %56 = vadd.xlane.f32.xlu0 %v49
    %v57 = vpop.xlane.xlu0 %56
    %58 = vadd.xlane.f32.xlu0 %v51
    %v59 = vpop.xlane.xlu0 %58
    %60 = vadd.xlane.f32.xlu0 %v53
    %v61 = vpop.xlane.xlu0 %60
    %v62 = vrcp.pop %v55
    %v63 = vmul.f32 %v47, %v62
    %v64 = vrcp.pop %v57
    %v65 = vmul.f32 %v49, %v64
    %v66 = vrcp.pop %v59
    %v67 = vmul.f32 %v51, %v66
    %v68 = vrcp.pop %v61
    %v69 = vmul.f32 %v53, %v68
    %70 = vst [vmem:[%s7] sm:$0xff] %v63
    %71 = vst [vmem:[%s7 + $0x8] sm:$0xff] %v65
    %72 = vst [vmem:[%s7 + $0x10] sm:$0xff] %v67
    %73 = vst [vmem:[%s7 + $0x18] sm:$0xff] %v69
    %v74 = vld [vmem:[%s1] sm:$0xf]
    %v75 = vld [vmem:[%s1 + $0x4] sm:$0xf]
    %v76 = vld [vmem:[%s1 + $0x8] sm:$0xf]
    %v77 = vld [vmem:[%s1 + $0xc] sm:$0xf]
    %v78 = vld [vmem:[%s1 + $0x10] sm:$0xf]
    %v79 = vld [vmem:[%s1 + $0x14] sm:$0xf]
    %v80 = vld [vmem:[%s1 + $0x18] sm:$0xf]
    %v81 = vld [vmem:[%s1 + $0x1c] sm:$0xf]
    %v82 = vld [vmem:[%s1 + $0x20] sm:$0xf]
    %v83 = vld [vmem:[%s1 + $0x24] sm:$0xf]
    %v84 = vld [vmem:[%s1 + $0x28] sm:$0xf]
    %v85 = vld [vmem:[%s1 + $0x2c] sm:$0xf]
    %v86 = vld [vmem:[%s1 + $0x30] sm:$0xf]
    %v87 = vld [vmem:[%s1 + $0x34] sm:$0xf]
    %v88 = vld [vmem:[%s1 + $0x38] sm:$0xf]
    %v89 = vld [vmem:[%s1 + $0x3c] sm:$0xf]
    %v90 = vld [vmem:[%s1 + $0x40] sm:$0xf]
    %v91 = vld [vmem:[%s1 + $0x44] sm:$0xf]
    %v92 = vld [vmem:[%s1 + $0x48] sm:$0xf]
    %v93 = vld [vmem:[%s1 + $0x4c] sm:$0xf]
    %v94 = vld [vmem:[%s1 + $0x50] sm:$0xf]
    %v95 = vld [vmem:[%s1 + $0x54] sm:$0xf]
    %v96 = vld [vmem:[%s1 + $0x58] sm:$0xf]
    %v97 = vld [vmem:[%s1 + $0x5c] sm:$0xf]
    %v98 = vld [vmem:[%s1 + $0x60] sm:$0xf]
    %v99 = vld [vmem:[%s1 + $0x64] sm:$0xf]
    %v100 = vld [vmem:[%s1 + $0x68] sm:$0xf]
    %v101 = vld [vmem:[%s1 + $0x6c] sm:$0xf]
    %v102 = vld [vmem:[%s1 + $0x70] sm:$0xf]
    %v103 = vld [vmem:[%s1 + $0x74] sm:$0xf]
    %v104 = vld [vmem:[%s1 + $0x78] sm:$0xf]
    %v105 = vld [vmem:[%s1 + $0x7c] sm:$0xf]
    %v106 = vld [vmem:[%s1 + $0x80] sm:$0xf]
    %v107 = vld [vmem:[%s1 + $0x84] sm:$0xf]
    %v108 = vld [vmem:[%s1 + $0x88] sm:$0xf]
    %v109 = vld [vmem:[%s1 + $0x8c] sm:$0xf]
    %v110 = vld [vmem:[%s1 + $0x90] sm:$0xf]
    %v111 = vld [vmem:[%s1 + $0x94] sm:$0xf]
    %v112 = vld [vmem:[%s1 + $0x98] sm:$0xf]
    %v113 = vld [vmem:[%s1 + $0x9c] sm:$0xf]
    %v114 = vld [vmem:[%s1 + $0xa0] sm:$0xf]
    %v115 = vld [vmem:[%s1 + $0xa4] sm:$0xf]
    %v116 = vld [vmem:[%s1 + $0xa8] sm:$0xf]
    %v117 = vld [vmem:[%s1 + $0xac] sm:$0xf]
    %v118 = vld [vmem:[%s1 + $0xb0] sm:$0xf]
    %v119 = vld [vmem:[%s1 + $0xb4] sm:$0xf]
    %v120 = vld [vmem:[%s1 + $0xb8] sm:$0xf]
    %v121 = vld [vmem:[%s1 + $0xbc] sm:$0xf]
    %v122 = vld [vmem:[%s1 + $0xc0] sm:$0xf]
    %v123 = vld [vmem:[%s1 + $0xc4] sm:$0xf]
    %v124 = vld [vmem:[%s1 + $0xc8] sm:$0xf]
    %v125 = vld [vmem:[%s1 + $0xcc] sm:$0xf]
    %v126 = vld [vmem:[%s1 + $0xd0] sm:$0xf]
    %v127 = vld [vmem:[%s1 + $0xd4] sm:$0xf]
    %v128 = vld [vmem:[%s1 + $0xd8] sm:$0xf]
    %v129 = vld [vmem:[%s1 + $0xdc] sm:$0xf]
    %v130 = vld [vmem:[%s1 + $0xe0] sm:$0xf]
    %v131 = vld [vmem:[%s1 + $0xe4] sm:$0xf]
    %v132 = vld [vmem:[%s1 + $0xe8] sm:$0xf]
    %v133 = vld [vmem:[%s1 + $0xec] sm:$0xf]
    %v134 = vld [vmem:[%s1 + $0xf0] sm:$0xf]
    %v135 = vld [vmem:[%s1 + $0xf4] sm:$0xf]
    %v136 = vld [vmem:[%s1 + $0xf8] sm:$0xf]
    %v137 = vld [vmem:[%s1 + $0xfc] sm:$0xf]
    %v138 = vld [vmem:[%s2] sm:$0xf]
    %v139 = vld [vmem:[%s2 + $0x4] sm:$0xf]
    %v140 = vld [vmem:[%s2 + $0x8] sm:$0xf]
    %v141 = vld [vmem:[%s2 + $0xc] sm:$0xf]
    %v206 = vunpack.c.l.b16 %v74
    %v207 = vunpack.c.l.b16 %v75
    %v208 = vunpack.c.l.b16 %v76
    %v209 = vunpack.c.l.b16 %v77
    %v210 = vunpack.c.l.b16 %v78
    %v211 = vunpack.c.l.b16 %v79
    %v212 = vunpack.c.l.b16 %v80
    %v213 = vunpack.c.l.b16 %v81
    %v214 = vunpack.c.l.b16 %v82
    %v215 = vunpack.c.l.b16 %v83
    %v216 = vunpack.c.l.b16 %v84
    %v217 = vunpack.c.l.b16 %v85
    %v218 = vunpack.c.l.b16 %v86
    %v219 = vunpack.c.l.b16 %v87
    %v220 = vunpack.c.l.b16 %v88
    %v221 = vunpack.c.l.b16 %v89
    %v222 = vunpack.c.l.b16 %v90
    %v223 = vunpack.c.l.b16 %v91
    %v224 = vunpack.c.l.b16 %v92
    %v225 = vunpack.c.l.b16 %v93
    %v226 = vunpack.c.l.b16 %v94
    %v227 = vunpack.c.l.b16 %v95
    %v228 = vunpack.c.l.b16 %v96
    %v229 = vunpack.c.l.b16 %v97
    %v230 = vunpack.c.l.b16 %v98
    %v231 = vunpack.c.l.b16 %v99
    %v232 = vunpack.c.l.b16 %v100
    %v233 = vunpack.c.l.b16 %v101
    %v234 = vunpack.c.l.b16 %v102
    %v235 = vunpack.c.l.b16 %v103
    %v236 = vunpack.c.l.b16 %v104
    %v237 = vunpack.c.l.b16 %v105
    %v238 = vunpack.c.l.b16 %v106
    %v239 = vunpack.c.l.b16 %v107
    %v240 = vunpack.c.l.b16 %v108
    %v241 = vunpack.c.l.b16 %v109
    %v242 = vunpack.c.l.b16 %v110
    %v243 = vunpack.c.l.b16 %v111
    %v244 = vunpack.c.l.b16 %v112
    %v245 = vunpack.c.l.b16 %v113
    %v246 = vunpack.c.l.b16 %v114
    %v247 = vunpack.c.l.b16 %v115
    %v248 = vunpack.c.l.b16 %v116
    %v249 = vunpack.c.l.b16 %v117
    %v250 = vunpack.c.l.b16 %v118
    %v251 = vunpack.c.l.b16 %v119
    %v252 = vunpack.c.l.b16 %v120
    %v253 = vunpack.c.l.b16 %v121
    %v254 = vunpack.c.l.b16 %v122
    %v255 = vunpack.c.l.b16 %v123
    %v256 = vunpack.c.l.b16 %v124
    %v257 = vunpack.c.l.b16 %v125
    %v258 = vunpack.c.l.b16 %v126
    %v259 = vunpack.c.l.b16 %v127
    %v260 = vunpack.c.l.b16 %v128
    %v261 = vunpack.c.l.b16 %v129
    %v262 = vunpack.c.l.b16 %v130
    %v263 = vunpack.c.l.b16 %v131
    %v264 = vunpack.c.l.b16 %v132
    %v265 = vunpack.c.l.b16 %v133
    %v266 = vunpack.c.l.b16 %v134
    %v267 = vunpack.c.l.b16 %v135
    %v268 = vunpack.c.l.b16 %v136
    %v269 = vunpack.c.l.b16 %v137
    %v270 = vpack.c.b16 %v207, %v206
    %v271 = vpack.c.b16 %v209, %v208
    %v272 = vpack.c.b16 %v211, %v210
    %v273 = vpack.c.b16 %v213, %v212
    %v274 = vpack.c.b16 %v215, %v214
    %v275 = vpack.c.b16 %v217, %v216
    %v276 = vpack.c.b16 %v219, %v218
    %v277 = vpack.c.b16 %v221, %v220
    %v278 = vpack.c.b16 %v223, %v222
    %v279 = vpack.c.b16 %v225, %v224
    %v280 = vpack.c.b16 %v227, %v226
    %v281 = vpack.c.b16 %v229, %v228
    %v282 = vpack.c.b16 %v231, %v230
    %v283 = vpack.c.b16 %v233, %v232
    %v284 = vpack.c.b16 %v235, %v234
    %v285 = vpack.c.b16 %v237, %v236
    %v286 = vpack.c.b16 %v239, %v238
    %v287 = vpack.c.b16 %v241, %v240
    %v288 = vpack.c.b16 %v243, %v242
    %v289 = vpack.c.b16 %v245, %v244
    %v290 = vpack.c.b16 %v247, %v246
    %v291 = vpack.c.b16 %v249, %v248
    %v292 = vpack.c.b16 %v251, %v250
    %v293 = vpack.c.b16 %v253, %v252
    %v294 = vpack.c.b16 %v255, %v254
    %v295 = vpack.c.b16 %v257, %v256
    %v296 = vpack.c.b16 %v259, %v258
    %v297 = vpack.c.b16 %v261, %v260
    %v298 = vpack.c.b16 %v263, %v262
    %v299 = vpack.c.b16 %v265, %v264
    %v300 = vpack.c.b16 %v267, %v266
    %v301 = vpack.c.b16 %v269, %v268
    %v306 = vunpack.c.l.b16 %v138
    %v307 = vunpack.c.l.b16 %v139
    %v308 = vunpack.c.l.b16 %v140
    %v309 = vunpack.c.l.b16 %v141
    %v310 = vpack.c.b16 %v307, %v306
    %v311 = vpack.c.b16 %v309, %v308
    %vm314 = vcmask 261120
    %v316 = vsel %vm314, %v270, 0
    %v319 = vsel %vm314, %v271, 0
    %v322 = vsel %vm314, %v272, 0
    %v325 = vsel %vm314, %v273, 0
    %v328 = vsel %vm314, %v274, 0
    %v331 = vsel %vm314, %v275, 0
    %v334 = vsel %vm314, %v276, 0
    %v337 = vsel %vm314, %v277, 0
    %v340 = vsel %vm314, %v278, 0
    %v343 = vsel %vm314, %v279, 0
    %v346 = vsel %vm314, %v280, 0
    %v349 = vsel %vm314, %v281, 0
    %v352 = vsel %vm314, %v282, 0
    %v355 = vsel %vm314, %v283, 0
    %v358 = vsel %vm314, %v284, 0
    %v361 = vsel %vm314, %v285, 0
    %v364 = vsel %vm314, %v286, 0
    %v367 = vsel %vm314, %v287, 0
    %v370 = vsel %vm314, %v288, 0
    %v373 = vsel %vm314, %v289, 0
    %v376 = vsel %vm314, %v290, 0
    %v379 = vsel %vm314, %v291, 0
    %v382 = vsel %vm314, %v292, 0
    %v385 = vsel %vm314, %v293, 0
    %v388 = vsel %vm314, %v294, 0
    %v391 = vsel %vm314, %v295, 0
    %v394 = vsel %vm314, %v296, 0
    %v397 = vsel %vm314, %v297, 0
    %v400 = vsel %vm314, %v298, 0
    %v403 = vsel %vm314, %v299, 0
    %v406 = vsel %vm314, %v300, 0
    %v409 = vsel %vm314, %v301, 0
    %411 = vmatprep.subr.bf16.mxu0 0
    %412 = vmatpush1.bf16.msra.mxu0 %v310
    %413 = vmatprep.subr.bf16.mxu0 0
    %414 = vmatpush1.bf16.msra.mxu0 %v311
    %415 = vmatprep.subr.bf16.mxu0 0
    %416 = vmatpush1.bf16.msra.mxu0 0
    %417 = vmatprep.subr.bf16.mxu0 0
    %418 = vmatpush1.bf16.msra.mxu0 0
    %419 = vmatprep.subr.bf16.mxu0 0
    %420 = vmatpush1.bf16.msra.mxu0 0
    %421 = vmatprep.subr.bf16.mxu0 0
    %422 = vmatpush1.bf16.msra.mxu0 0
    %423 = vmatprep.subr.bf16.mxu0 0
    %424 = vmatpush1.bf16.msra.mxu0 0
    %425 = vmatprep.subr.bf16.mxu0 0
    %426 = vmatpush1.bf16.msra.mxu0 0
    %427 = vmatprep.subr.bf16.mxu0 0
    %428 = vmatpush1.bf16.msra.mxu0 0
    %429 = vmatprep.subr.bf16.mxu0 0
    %430 = vmatpush1.bf16.msra.mxu0 0
    %431 = vmatprep.subr.bf16.mxu0 0
    %432 = vmatpush1.bf16.msra.mxu0 0
    %433 = vmatprep.subr.bf16.mxu0 0
    %434 = vmatpush1.bf16.msra.mxu0 0
    %435 = vmatprep.subr.bf16.mxu0 0
    %436 = vmatpush1.bf16.msra.mxu0 0
    %437 = vmatprep.subr.bf16.mxu0 0
    %438 = vmatpush1.bf16.msra.mxu0 0
    %439 = vmatprep.subr.bf16.mxu0 0
    %440 = vmatpush1.bf16.msra.mxu0 0
    %441 = vmatprep.subr.bf16.mxu0 0
    %442 = vmatpush1.bf16.msra.mxu0 0
    %443 = vmatprep.mubr.bf16.mxu0 0
    %444 = vmatmul.mubr.bf16.gmra.mrb[0].mxu0 %v316
    %v445 = vpop.f32.mrb[0].mxu0
    %v446 = vadd.f32 0.0, %v445
    %v447 = vpop.f32.mrb[0].mxu0
    %v448 = vpop.f32.mrb[0].mxu0
    %v449 = vadd.f32 0.0, %v448
    %v450 = vpop.f32.mrb[0].mxu0
    %451 = vmatprep.mubr.bf16.mxu0 0
    %452 = vmatmul.mubr.bf16.gmra.mrb[0].mxu0 %v319
    %v453 = vpop.f32.mrb[0].mxu0
    %v454 = vadd.f32 0.0, %v453
    %v455 = vpop.f32.mrb[0].mxu0
    %v456 = vpop.f32.mrb[0].mxu0
    %v457 = vadd.f32 0.0, %v456
    %v458 = vpop.f32.mrb[0].mxu0
    %459 = vmatprep.mubr.bf16.mxu0 0
    %460 = vmatmul.mubr.bf16.gmra.mrb[0].mxu0 %v322
    %v461 = vpop.f32.mrb[0].mxu0
    %v462 = vadd.f32 0.0, %v461
    %v463 = vpop.f32.mrb[0].mxu0
    %v464 = vpop.f32.mrb[0].mxu0
    %v465 = vadd.f32 0.0, %v464
    %v466 = vpop.f32.mrb[0].mxu0
    %467 = vmatprep.mubr.bf16.mxu0 0
    %468 = vmatmul.mubr.bf16.gmra.mrb[0].mxu0 %v325
    %v469 = vpop.f32.mrb[0].mxu0
    %v470 = vadd.f32 0.0, %v469
    %v471 = vpop.f32.mrb[0].mxu0
    %v472 = vpop.f32.mrb[0].mxu0
    %v473 = vadd.f32 0.0, %v472
    %v474 = vpop.f32.mrb[0].mxu0
    %475 = vmatprep.mubr.bf16.mxu0 0
    %476 = vmatmul.mubr.bf16.gmra.mrb[0].mxu0 %v328
    %v477 = vpop.f32.mrb[0].mxu0
    %v478 = vadd.f32 0.0, %v477
    %v479 = vpop.f32.mrb[0].mxu0
    %v480 = vpop.f32.mrb[0].mxu0
    %v481 = vadd.f32 0.0, %v480
    %v482 = vpop.f32.mrb[0].mxu0
    %483 = vmatprep.mubr.bf16.mxu0 0
    %484 = vmatmul.mubr.bf16.gmra.mrb[0].mxu0 %v331
    %v485 = vpop.f32.mrb[0].mxu0
    %v486 = vadd.f32 0.0, %v485
    %v487 = vpop.f32.mrb[0].mxu0
    %v488 = vpop.f32.mrb[0].mxu0
    %v489 = vadd.f32 0.0, %v488
    %v490 = vpop.f32.mrb[0].mxu0
    %491 = vmatprep.mubr.bf16.mxu0 0
    %492 = vmatmul.mubr.bf16.gmra.mrb[0].mxu0 %v334
    %v493 = vpop.f32.mrb[0].mxu0
    %v494 = vadd.f32 0.0, %v493
    %v495 = vpop.f32.mrb[0].mxu0
    %v496 = vpop.f32.mrb[0].mxu0
    %v497 = vadd.f32 0.0, %v496
    %v498 = vpop.f32.mrb[0].mxu0
    %499 = vmatprep.mubr.bf16.mxu0 0
    %500 = vmatmul.mubr.bf16.gmra.mrb[0].mxu0 %v337
    %v501 = vpop.f32.mrb[0].mxu0
    %v502 = vadd.f32 0.0, %v501
    %v503 = vpop.f32.mrb[0].mxu0
    %v504 = vpop.f32.mrb[0].mxu0
    %v505 = vadd.f32 0.0, %v504
    %v506 = vpop.f32.mrb[0].mxu0
    %507 = vmatprep.mubr.bf16.mxu0 0
    %508 = vmatmul.mubr.bf16.gmra.mrb[0].mxu0 %v340
    %v509 = vpop.f32.mrb[0].mxu0
    %v510 = vadd.f32 0.0, %v509
    %v511 = vpop.f32.mrb[0].mxu0
    %v512 = vpop.f32.mrb[0].mxu0
    %v513 = vadd.f32 0.0, %v512
    %v514 = vpop.f32.mrb[0].mxu0
    %515 = vmatprep.mubr.bf16.mxu0 0
    %516 = vmatmul.mubr.bf16.gmra.mrb[0].mxu0 %v343
    %v517 = vpop.f32.mrb[0].mxu0
    %v518 = vadd.f32 0.0, %v517
    %v519 = vpop.f32.mrb[0].mxu0
    %v520 = vpop.f32.mrb[0].mxu0
    %v521 = vadd.f32 0.0, %v520
    %v522 = vpop.f32.mrb[0].mxu0
    %523 = vmatprep.mubr.bf16.mxu0 0
    %524 = vmatmul.mubr.bf16.gmra.mrb[0].mxu0 %v346
    %v525 = vpop.f32.mrb[0].mxu0
    %v526 = vadd.f32 0.0, %v525
    %v527 = vpop.f32.mrb[0].mxu0
    %v528 = vpop.f32.mrb[0].mxu0
    %v529 = vadd.f32 0.0, %v528
    %v530 = vpop.f32.mrb[0].mxu0
    %531 = vmatprep.mubr.bf16.mxu0 0
    %532 = vmatmul.mubr.bf16.gmra.mrb[0].mxu0 %v349
    %v533 = vpop.f32.mrb[0].mxu0
    %v534 = vadd.f32 0.0, %v533
    %v535 = vpop.f32.mrb[0].mxu0
    %v536 = vpop.f32.mrb[0].mxu0
    %v537 = vadd.f32 0.0, %v536
    %v538 = vpop.f32.mrb[0].mxu0
    %539 = vmatprep.mubr.bf16.mxu0 0
    %540 = vmatmul.mubr.bf16.gmra.mrb[0].mxu0 %v352
    %v541 = vpop.f32.mrb[0].mxu0
    %v542 = vadd.f32 0.0, %v541
    %v543 = vpop.f32.mrb[0].mxu0
    %v544 = vpop.f32.mrb[0].mxu0
    %v545 = vadd.f32 0.0, %v544
    %v546 = vpop.f32.mrb[0].mxu0
    %547 = vmatprep.mubr.bf16.mxu0 0
    %548 = vmatmul.mubr.bf16.gmra.mrb[0].mxu0 %v355
    %v549 = vpop.f32.mrb[0].mxu0
    %v550 = vadd.f32 0.0, %v549
    %v551 = vpop.f32.mrb[0].mxu0
    %v552 = vpop.f32.mrb[0].mxu0
    %v553 = vadd.f32 0.0, %v552
    %v554 = vpop.f32.mrb[0].mxu0
    %555 = vmatprep.mubr.bf16.mxu0 0
    %556 = vmatmul.mubr.bf16.gmra.mrb[0].mxu0 %v358
    %v557 = vpop.f32.mrb[0].mxu0
    %v558 = vadd.f32 0.0, %v557
    %v559 = vpop.f32.mrb[0].mxu0
    %v560 = vpop.f32.mrb[0].mxu0
    %v561 = vadd.f32 0.0, %v560
    %v562 = vpop.f32.mrb[0].mxu0
    %563 = vmatprep.mubr.bf16.mxu0 0
    %564 = vmatmul.mubr.bf16.gmra.mrb[0].mxu0 %v361
    %v565 = vpop.f32.mrb[0].mxu0
    %v566 = vadd.f32 0.0, %v565
    %v567 = vpop.f32.mrb[0].mxu0
    %v568 = vpop.f32.mrb[0].mxu0
    %v569 = vadd.f32 0.0, %v568
    %v570 = vpop.f32.mrb[0].mxu0
    %571 = vmatprep.mubr.bf16.mxu0 0
    %572 = vmatmul.mubr.bf16.gmra.mrb[0].mxu0 %v364
    %v573 = vpop.f32.mrb[0].mxu0
    %v574 = vadd.f32 0.0, %v573
    %v575 = vpop.f32.mrb[0].mxu0
    %v576 = vpop.f32.mrb[0].mxu0
    %v577 = vadd.f32 0.0, %v576
    %v578 = vpop.f32.mrb[0].mxu0
    %579 = vmatprep.mubr.bf16.mxu0 0
    %580 = vmatmul.mubr.bf16.gmra.mrb[0].mxu0 %v367
    %v581 = vpop.f32.mrb[0].mxu0
    %v582 = vadd.f32 0.0, %v581
    %v583 = vpop.f32.mrb[0].mxu0
    %v584 = vpop.f32.mrb[0].mxu0
    %v585 = vadd.f32 0.0, %v584
    %v586 = vpop.f32.mrb[0].mxu0
    %587 = vmatprep.mubr.bf16.mxu0 0
    %588 = vmatmul.mubr.bf16.gmra.mrb[0].mxu0 %v370
    %v589 = vpop.f32.mrb[0].mxu0
    %v590 = vadd.f32 0.0, %v589
    %v591 = vpop.f32.mrb[0].mxu0
    %v592 = vpop.f32.mrb[0].mxu0
    %v593 = vadd.f32 0.0, %v592
    %v594 = vpop.f32.mrb[0].mxu0
    %595 = vmatprep.mubr.bf16.mxu0 0
    %596 = vmatmul.mubr.bf16.gmra.mrb[0].mxu0 %v373
    %v597 = vpop.f32.mrb[0].mxu0
    %v598 = vadd.f32 0.0, %v597
    %v599 = vpop.f32.mrb[0].mxu0
    %v600 = vpop.f32.mrb[0].mxu0
    %v601 = vadd.f32 0.0, %v600
    %v602 = vpop.f32.mrb[0].mxu0
    %603 = vmatprep.mubr.bf16.mxu0 0
    %604 = vmatmul.mubr.bf16.gmra.mrb[0].mxu0 %v376
    %v605 = vpop.f32.mrb[0].mxu0
    %v606 = vadd.f32 0.0, %v605
    %v607 = vpop.f32.mrb[0].mxu0
    %v608 = vpop.f32.mrb[0].mxu0
    %v609 = vadd.f32 0.0, %v608
    %v610 = vpop.f32.mrb[0].mxu0
    %611 = vmatprep.mubr.bf16.mxu0 0
    %612 = vmatmul.mubr.bf16.gmra.mrb[0].mxu0 %v379
    %v613 = vpop.f32.mrb[0].mxu0
    %v614 = vadd.f32 0.0, %v613
    %v615 = vpop.f32.mrb[0].mxu0
    %v616 = vpop.f32.mrb[0].mxu0
    %v617 = vadd.f32 0.0, %v616
    %v618 = vpop.f32.mrb[0].mxu0
    %619 = vmatprep.mubr.bf16.mxu0 0
    %620 = vmatmul.mubr.bf16.gmra.mrb[0].mxu0 %v382
    %v621 = vpop.f32.mrb[0].mxu0
    %v622 = vadd.f32 0.0, %v621
    %v623 = vpop.f32.mrb[0].mxu0
    %v624 = vpop.f32.mrb[0].mxu0
    %v625 = vadd.f32 0.0, %v624
    %v626 = vpop.f32.mrb[0].mxu0
    %627 = vmatprep.mubr.bf16.mxu0 0
    %628 = vmatmul.mubr.bf16.gmra.mrb[0].mxu0 %v385
    %v629 = vpop.f32.mrb[0].mxu0
    %v630 = vadd.f32 0.0, %v629
    %v631 = vpop.f32.mrb[0].mxu0
    %v632 = vpop.f32.mrb[0].mxu0
    %v633 = vadd.f32 0.0, %v632
    %v634 = vpop.f32.mrb[0].mxu0
    %635 = vmatprep.mubr.bf16.mxu0 0
    %636 = vmatmul.mubr.bf16.gmra.mrb[0].mxu0 %v388
    %v637 = vpop.f32.mrb[0].mxu0
    %v638 = vadd.f32 0.0, %v637
    %v639 = vpop.f32.mrb[0].mxu0
    %v640 = vpop.f32.mrb[0].mxu0
    %v641 = vadd.f32 0.0, %v640
    %v642 = vpop.f32.mrb[0].mxu0
    %643 = vmatprep.mubr.bf16.mxu0 0
    %644 = vmatmul.mubr.bf16.gmra.mrb[0].mxu0 %v391
    %v645 = vpop.f32.mrb[0].mxu0
    %v646 = vadd.f32 0.0, %v645
    %v647 = vpop.f32.mrb[0].mxu0
    %v648 = vpop.f32.mrb[0].mxu0
    %v649 = vadd.f32 0.0, %v648
    %v650 = vpop.f32.mrb[0].mxu0
    %651 = vmatprep.mubr.bf16.mxu0 0
    %652 = vmatmul.mubr.bf16.gmra.mrb[0].mxu0 %v394
    %v653 = vpop.f32.mrb[0].mxu0
    %v654 = vadd.f32 0.0, %v653
    %v655 = vpop.f32.mrb[0].mxu0
    %v656 = vpop.f32.mrb[0].mxu0
    %v657 = vadd.f32 0.0, %v656
    %v658 = vpop.f32.mrb[0].mxu0
    %659 = vmatprep.mubr.bf16.mxu0 0
    %660 = vmatmul.mubr.bf16.gmra.mrb[0].mxu0 %v397
    %v661 = vpop.f32.mrb[0].mxu0
    %v662 = vadd.f32 0.0, %v661
    %v663 = vpop.f32.mrb[0].mxu0
    %v664 = vpop.f32.mrb[0].mxu0
    %v665 = vadd.f32 0.0, %v664
    %v666 = vpop.f32.mrb[0].mxu0
    %667 = vmatprep.mubr.bf16.mxu0 0
    %668 = vmatmul.mubr.bf16.gmra.mrb[0].mxu0 %v400
    %v669 = vpop.f32.mrb[0].mxu0
    %v670 = vadd.f32 0.0, %v669
    %v671 = vpop.f32.mrb[0].mxu0
    %v672 = vpop.f32.mrb[0].mxu0
    %v673 = vadd.f32 0.0, %v672
    %v674 = vpop.f32.mrb[0].mxu0
    %675 = vmatprep.mubr.bf16.mxu0 0
    %676 = vmatmul.mubr.bf16.gmra.mrb[0].mxu0 %v403
    %v677 = vpop.f32.mrb[0].mxu0
    %v678 = vadd.f32 0.0, %v677
    %v679 = vpop.f32.mrb[0].mxu0
    %v680 = vpop.f32.mrb[0].mxu0
    %v681 = vadd.f32 0.0, %v680
    %v682 = vpop.f32.mrb[0].mxu0
    %683 = vmatprep.mubr.bf16.mxu0 0
    %684 = vmatmul.mubr.bf16.gmra.mrb[0].mxu0 %v406
    %v685 = vpop.f32.mrb[0].mxu0
    %v686 = vadd.f32 0.0, %v685
    %v687 = vpop.f32.mrb[0].mxu0
    %v688 = vpop.f32.mrb[0].mxu0
    %v689 = vadd.f32 0.0, %v688
    %v690 = vpop.f32.mrb[0].mxu0
    %691 = vmatprep.mubr.bf16.mxu0 0
    %692 = vmatmul.mubr.bf16.gmra.mrb[0].mxu0 %v409
    %v693 = vpop.f32.mrb[0].mxu0
    %v694 = vadd.f32 0.0, %v693
    %v695 = vpop.f32.mrb[0].mxu0
    %v696 = vpop.f32.mrb[0].mxu0
    %v697 = vadd.f32 0.0, %v696
    %v698 = vpop.f32.mrb[0].mxu0
    %699 = vdwg.mxu0
    %v700 = vadd.f32 %v446, %v449
    %v701 = vadd.f32 %v700, %v454
    %v702 = vadd.f32 %v701, %v457
    %v703 = vadd.f32 %v702, %v462
    %v704 = vadd.f32 %v703, %v465
    %v705 = vadd.f32 %v704, %v470
    %v706 = vadd.f32 %v705, %v473
    %v707 = vadd.f32 %v706, %v478
    %v708 = vadd.f32 %v707, %v481
    %v709 = vadd.f32 %v708, %v486
    %v710 = vadd.f32 %v709, %v489
    %v711 = vadd.f32 %v710, %v494
    %v712 = vadd.f32 %v711, %v497
    %v713 = vadd.f32 %v712, %v502
    %v714 = vadd.f32 %v713, %v505
    %v715 = vadd.f32 %v714, %v510
    %v716 = vadd.f32 %v715, %v513
    %v717 = vadd.f32 %v716, %v518
    %v718 = vadd.f32 %v717, %v521
    %v719 = vadd.f32 %v718, %v526
    %v720 = vadd.f32 %v719, %v529
    %v721 = vadd.f32 %v720, %v534
    %v722 = vadd.f32 %v721, %v537
    %v723 = vadd.f32 %v722, %v542
    %v724 = vadd.f32 %v723, %v545
    %v725 = vadd.f32 %v724, %v550
    %v726 = vadd.f32 %v725, %v553
    %v727 = vadd.f32 %v726, %v558
    %v728 = vadd.f32 %v727, %v561
    %v729 = vadd.f32 %v728, %v566
    %v730 = vadd.f32 %v729, %v569
    %v731 = vadd.f32 %v730, %v574
    %v732 = vadd.f32 %v731, %v577
    %v733 = vadd.f32 %v732, %v582
    %v734 = vadd.f32 %v733, %v585
    %v735 = vadd.f32 %v734, %v590
    %v736 = vadd.f32 %v735, %v593
    %v737 = vadd.f32 %v736, %v598
    %v738 = vadd.f32 %v737, %v601
    %v739 = vadd.f32 %v738, %v606
    %v740 = vadd.f32 %v739, %v609
    %v741 = vadd.f32 %v740, %v614
    %v742 = vadd.f32 %v741, %v617
    %v743 = vadd.f32 %v742, %v622
    %v744 = vadd.f32 %v743, %v625
    %v745 = vadd.f32 %v744, %v630
    %v746 = vadd.f32 %v745, %v633
    %v747 = vadd.f32 %v746, %v638
    %v748 = vadd.f32 %v747, %v641
    %v749 = vadd.f32 %v748, %v646
    %v750 = vadd.f32 %v749, %v649
    %v751 = vadd.f32 %v750, %v654
    %v752 = vadd.f32 %v751, %v657
    %v753 = vadd.f32 %v752, %v662
    %v754 = vadd.f32 %v753, %v665
    %v755 = vadd.f32 %v754, %v670
    %v756 = vadd.f32 %v755, %v673
    %v757 = vadd.f32 %v756, %v678
    %v758 = vadd.f32 %v757, %v681
    %v759 = vadd.f32 %v758, %v686
    %v760 = vadd.f32 %v759, %v689
    %v761 = vadd.f32 %v760, %v694
    %v762 = vadd.f32 %v761, %v697
    %v763 = vrot.slane %v762, 4
    %v764 = vadd.f32 %v762, %v763
    %v765 = vrot.slane %v764, 2
    %v766 = vadd.f32 %v764, %v765
    %v767 = vrot.slane %v766, 1
    %v768 = vadd.f32 %v766, %v767
    %v769 = vmul.f32 %v768, 0.001953125
    %v770 = vmul.f32 %v446, %v446
    %v771 = vmul.f32 %v449, %v449
    %v772 = vmul.f32 %v454, %v454
    %v773 = vmul.f32 %v457, %v457
    %v774 = vmul.f32 %v462, %v462
    %v775 = vmul.f32 %v465, %v465
    %v776 = vmul.f32 %v470, %v470
    %v777 = vmul.f32 %v473, %v473
    %v778 = vmul.f32 %v478, %v478
    %v779 = vmul.f32 %v481, %v481
    %v780 = vmul.f32 %v486, %v486
    %v781 = vmul.f32 %v489, %v489
    %v782 = vmul.f32 %v494, %v494
    %v783 = vmul.f32 %v497, %v497
    %v784 = vmul.f32 %v502, %v502
    %v785 = vmul.f32 %v505, %v505
    %v786 = vmul.f32 %v510, %v510
    %v787 = vmul.f32 %v513, %v513
    %v788 = vmul.f32 %v518, %v518
    %v789 = vmul.f32 %v521, %v521
    %v790 = vmul.f32 %v526, %v526
    %v791 = vmul.f32 %v529, %v529
    %v792 = vmul.f32 %v534, %v534
    %v793 = vmul.f32 %v537, %v537
    %v794 = vmul.f32 %v542, %v542
    %v795 = vmul.f32 %v545, %v545
    %v796 = vmul.f32 %v550, %v550
    %v797 = vmul.f32 %v553, %v553
    %v798 = vmul.f32 %v558, %v558
    %v799 = vmul.f32 %v561, %v561
    %v800 = vmul.f32 %v566, %v566
    %v801 = vmul.f32 %v569, %v569
    %v802 = vmul.f32 %v574, %v574
    %v803 = vmul.f32 %v577, %v577
    %v804 = vmul.f32 %v582, %v582
    %v805 = vmul.f32 %v585, %v585
    %v806 = vmul.f32 %v590, %v590
    %v807 = vmul.f32 %v593, %v593
    %v808 = vmul.f32 %v598, %v598
    %v809 = vmul.f32 %v601, %v601
    %v810 = vmul.f32 %v606, %v606
    %v811 = vmul.f32 %v609, %v609
    %v812 = vmul.f32 %v614, %v614
    %v813 = vmul.f32 %v617, %v617
    %v814 = vmul.f32 %v622, %v622
    %v815 = vmul.f32 %v625, %v625
    %v816 = vmul.f32 %v630, %v630
    %v817 = vmul.f32 %v633, %v633
    %v818 = vmul.f32 %v638, %v638
    %v819 = vmul.f32 %v641, %v641
    %v820 = vmul.f32 %v646, %v646
    %v821 = vmul.f32 %v649, %v649
    %v822 = vmul.f32 %v654, %v654
    %v823 = vmul.f32 %v657, %v657
    %v824 = vmul.f32 %v662, %v662
    %v825 = vmul.f32 %v665, %v665
    %v826 = vmul.f32 %v670, %v670
    %v827 = vmul.f32 %v673, %v673
    %v828 = vmul.f32 %v678, %v678
    %v829 = vmul.f32 %v681, %v681
    %v830 = vmul.f32 %v686, %v686
    %v831 = vmul.f32 %v689, %v689
    %v832 = vmul.f32 %v694, %v694
    %v833 = vmul.f32 %v697, %v697
    %v834 = vadd.f32 %v770, %v771
    %v835 = vadd.f32 %v834, %v772
    %v836 = vadd.f32 %v835, %v773
    %v837 = vadd.f32 %v836, %v774
    %v838 = vadd.f32 %v837, %v775
    %v839 = vadd.f32 %v838, %v776
    %v840 = vadd.f32 %v839, %v777
    %v841 = vadd.f32 %v840, %v778
    %v842 = vadd.f32 %v841, %v779
    %v843 = vadd.f32 %v842, %v780
    %v844 = vadd.f32 %v843, %v781
    %v845 = vadd.f32 %v844, %v782
    %v846 = vadd.f32 %v845, %v783
    %v847 = vadd.f32 %v846, %v784
    %v848 = vadd.f32 %v847, %v785
    %v849 = vadd.f32 %v848, %v786
    %v850 = vadd.f32 %v849, %v787
    %v851 = vadd.f32 %v850, %v788
    %v852 = vadd.f32 %v851, %v789
    %v853 = vadd.f32 %v852, %v790
    %v854 = vadd.f32 %v853, %v791
    %v855 = vadd.f32 %v854, %v792
    %v856 = vadd.f32 %v855, %v793
    %v857 = vadd.f32 %v856, %v794
    %v858 = vadd.f32 %v857, %v795
    %v859 = vadd.f32 %v858, %v796
    %v860 = vadd.f32 %v859, %v797
    %v861 = vadd.f32 %v860, %v798
    %v862 = vadd.f32 %v861, %v799
    %v863 = vadd.f32 %v862, %v800
    %v864 = vadd.f32 %v863, %v801
    %v865 = vadd.f32 %v864, %v802
    %v866 = vadd.f32 %v865, %v803
    %v867 = vadd.f32 %v866, %v804
    %v868 = vadd.f32 %v867, %v805
    %v869 = vadd.f32 %v868, %v806
    %v870 = vadd.f32 %v869, %v807
    %v871 = vadd.f32 %v870, %v808
    %v872 = vadd.f32 %v871, %v809
    %v873 = vadd.f32 %v872, %v810
    %v874 = vadd.f32 %v873, %v811
    %v875 = vadd.f32 %v874, %v812
    %v876 = vadd.f32 %v875, %v813
    %v877 = vadd.f32 %v876, %v814
    %v878 = vadd.f32 %v877, %v815
    %v879 = vadd.f32 %v878, %v816
    %v880 = vadd.f32 %v879, %v817
    %v881 = vadd.f32 %v880, %v818
    %v882 = vadd.f32 %v881, %v819
    %v883 = vadd.f32 %v882, %v820
    %v884 = vadd.f32 %v883, %v821
    %v885 = vadd.f32 %v884, %v822
    %v886 = vadd.f32 %v885, %v823
    %v887 = vadd.f32 %v886, %v824
    %v888 = vadd.f32 %v887, %v825
    %v889 = vadd.f32 %v888, %v826
    %v890 = vadd.f32 %v889, %v827
    %v891 = vadd.f32 %v890, %v828
    %v892 = vadd.f32 %v891, %v829
    %v893 = vadd.f32 %v892, %v830
    %v894 = vadd.f32 %v893, %v831
    %v895 = vadd.f32 %v894, %v832
    %v896 = vadd.f32 %v895, %v833
    %v897 = vrot.slane %v896, 4
    %v898 = vadd.f32 %v896, %v897
    %v899 = vrot.slane %v898, 2
    %v900 = vadd.f32 %v898, %v899
    %v901 = vrot.slane %v900, 1
    %v902 = vadd.f32 %v900, %v901
    %v903 = vmul.f32 %v902, 0.001953125
    %v904 = vmul.f32 %v769, %v769
    %v905 = vsub.f32 %v903, %v904
    %v906 = vsub.f32 %v446, %v769
    %v907 = vsub.f32 %v449, %v769
    %v908 = vsub.f32 %v454, %v769
    %v909 = vsub.f32 %v457, %v769
    %v910 = vsub.f32 %v462, %v769
    %v911 = vsub.f32 %v465, %v769
    %v912 = vsub.f32 %v470, %v769
    %v913 = vsub.f32 %v473, %v769
    %v914 = vsub.f32 %v478, %v769
    %v915 = vsub.f32 %v481, %v769
    %v916 = vsub.f32 %v486, %v769
    %v917 = vsub.f32 %v489, %v769
    %v918 = vsub.f32 %v494, %v769
    %v919 = vsub.f32 %v497, %v769
    %v920 = vsub.f32 %v502, %v769
    %v921 = vsub.f32 %v505, %v769
    %v922 = vsub.f32 %v510, %v769
    %v923 = vsub.f32 %v513, %v769
    %v924 = vsub.f32 %v518, %v769
    %v925 = vsub.f32 %v521, %v769
    %v926 = vsub.f32 %v526, %v769
    %v927 = vsub.f32 %v529, %v769
    %v928 = vsub.f32 %v534, %v769
    %v929 = vsub.f32 %v537, %v769
    %v930 = vsub.f32 %v542, %v769
    %v931 = vsub.f32 %v545, %v769
    %v932 = vsub.f32 %v550, %v769
    %v933 = vsub.f32 %v553, %v769
    %v934 = vsub.f32 %v558, %v769
    %v935 = vsub.f32 %v561, %v769
    %v936 = vsub.f32 %v566, %v769
    %v937 = vsub.f32 %v569, %v769
    %v938 = vsub.f32 %v574, %v769
    %v939 = vsub.f32 %v577, %v769
    %v940 = vsub.f32 %v582, %v769
    %v941 = vsub.f32 %v585, %v769
    %v942 = vsub.f32 %v590, %v769
    %v943 = vsub.f32 %v593, %v769
    %v944 = vsub.f32 %v598, %v769
    %v945 = vsub.f32 %v601, %v769
    %v946 = vsub.f32 %v606, %v769
    %v947 = vsub.f32 %v609, %v769
    %v948 = vsub.f32 %v614, %v769
    %v949 = vsub.f32 %v617, %v769
    %v950 = vsub.f32 %v622, %v769
    %v951 = vsub.f32 %v625, %v769
    %v952 = vsub.f32 %v630, %v769
    %v953 = vsub.f32 %v633, %v769
    %v954 = vsub.f32 %v638, %v769
    %v955 = vsub.f32 %v641, %v769
    %v956 = vsub.f32 %v646, %v769
    %v957 = vsub.f32 %v649, %v769
    %v958 = vsub.f32 %v654, %v769
    %v959 = vsub.f32 %v657, %v769
    %v960 = vsub.f32 %v662, %v769
    %v961 = vsub.f32 %v665, %v769
    %v962 = vsub.f32 %v670, %v769
    %v963 = vsub.f32 %v673, %v769
    %v964 = vsub.f32 %v678, %v769
    %v965 = vsub.f32 %v681, %v769
    %v966 = vsub.f32 %v686, %v769
    %v967 = vsub.f32 %v689, %v769
    %v968 = vsub.f32 %v694, %v769
    %v969 = vsub.f32 %v697, %v769
    %v970 = vadd.f32 %v905, 1e-05
    %v971 = vrsqrt.pop %v970
    %v972 = vmul.f32 %v906, %v971
    %v973 = vmul.f32 %v907, %v971
    %v974 = vmul.f32 %v908, %v971
    %v975 = vmul.f32 %v909, %v971
    %v976 = vmul.f32 %v910, %v971
    %v977 = vmul.f32 %v911, %v971
    %v978 = vmul.f32 %v912, %v971
    %v979 = vmul.f32 %v913, %v971
    %v980 = vmul.f32 %v914, %v971
    %v981 = vmul.f32 %v915, %v971
    %v982 = vmul.f32 %v916, %v971
    %v983 = vmul.f32 %v917, %v971
    %v984 = vmul.f32 %v918, %v971
    %v985 = vmul.f32 %v919, %v971
    %v986 = vmul.f32 %v920, %v971
    %v987 = vmul.f32 %v921, %v971
    %v988 = vmul.f32 %v922, %v971
    %v989 = vmul.f32 %v923, %v971
    %v990 = vmul.f32 %v924, %v971
    %v991 = vmul.f32 %v925, %v971
    %v992 = vmul.f32 %v926, %v971
    %v993 = vmul.f32 %v927, %v971
    %v994 = vmul.f32 %v928, %v971
    %v995 = vmul.f32 %v929, %v971
    %v996 = vmul.f32 %v930, %v971
    %v997 = vmul.f32 %v931, %v971
    %v998 = vmul.f32 %v932, %v971
    %v999 = vmul.f32 %v933, %v971
    %v1000 = vmul.f32 %v934, %v971
    %v1001 = vmul.f32 %v935, %v971
    %v1002 = vmul.f32 %v936, %v971
    %v1003 = vmul.f32 %v937, %v971
    %v1004 = vmul.f32 %v938, %v971
    %v1005 = vmul.f32 %v939, %v971
    %v1006 = vmul.f32 %v940, %v971
    %v1007 = vmul.f32 %v941, %v971
    %v1008 = vmul.f32 %v942, %v971
    %v1009 = vmul.f32 %v943, %v971
    %v1010 = vmul.f32 %v944, %v971
    %v1011 = vmul.f32 %v945, %v971
    %v1012 = vmul.f32 %v946, %v971
    %v1013 = vmul.f32 %v947, %v971
    %v1014 = vmul.f32 %v948, %v971
    %v1015 = vmul.f32 %v949, %v971
    %v1016 = vmul.f32 %v950, %v971
    %v1017 = vmul.f32 %v951, %v971
    %v1018 = vmul.f32 %v952, %v971
    %v1019 = vmul.f32 %v953, %v971
    %v1020 = vmul.f32 %v954, %v971
    %v1021 = vmul.f32 %v955, %v971
    %v1022 = vmul.f32 %v956, %v971
    %v1023 = vmul.f32 %v957, %v971
    %v1024 = vmul.f32 %v958, %v971
    %v1025 = vmul.f32 %v959, %v971
    %v1026 = vmul.f32 %v960, %v971
    %v1027 = vmul.f32 %v961, %v971
    %v1028 = vmul.f32 %v962, %v971
    %v1029 = vmul.f32 %v963, %v971
    %v1030 = vmul.f32 %v964, %v971
    %v1031 = vmul.f32 %v965, %v971
    %v1032 = vmul.f32 %v966, %v971
    %v1033 = vmul.f32 %v967, %v971
    %v1034 = vmul.f32 %v968, %v971
    %v1035 = vmul.f32 %v969, %v971
    %v1036 = vld [vmem:[%s3] sm:$0x1]
    %v1038 = vlaneseq
    %v1039 = vshrl.u32 %v1038, 7
    %v1040 = vsub.s32 0, %v1039
    %v1041 = vrot.slane %v1036, %v1040
    %v1043 = vmul.f32 %v972, %v1041
    %v1044 = vmul.f32 %v973, %v1041
    %v1045 = vmul.f32 %v974, %v1041
    %v1046 = vmul.f32 %v975, %v1041
    %v1047 = vmul.f32 %v976, %v1041
    %v1048 = vmul.f32 %v977, %v1041
    %v1049 = vmul.f32 %v978, %v1041
    %v1050 = vmul.f32 %v979, %v1041
    %v1051 = vmul.f32 %v980, %v1041
    %v1052 = vmul.f32 %v981, %v1041
    %v1053 = vmul.f32 %v982, %v1041
    %v1054 = vmul.f32 %v983, %v1041
    %v1055 = vmul.f32 %v984, %v1041
    %v1056 = vmul.f32 %v985, %v1041
    %v1057 = vmul.f32 %v986, %v1041
    %v1058 = vmul.f32 %v987, %v1041
    %v1059 = vmul.f32 %v988, %v1041
    %v1060 = vmul.f32 %v989, %v1041
    %v1061 = vmul.f32 %v990, %v1041
    %v1062 = vmul.f32 %v991, %v1041
    %v1063 = vmul.f32 %v992, %v1041
    %v1064 = vmul.f32 %v993, %v1041
    %v1065 = vmul.f32 %v994, %v1041
    %v1066 = vmul.f32 %v995, %v1041
    %v1067 = vmul.f32 %v996, %v1041
    %v1068 = vmul.f32 %v997, %v1041
    %v1069 = vmul.f32 %v998, %v1041
    %v1070 = vmul.f32 %v999, %v1041
    %v1071 = vmul.f32 %v1000, %v1041
    %v1072 = vmul.f32 %v1001, %v1041
    %v1073 = vmul.f32 %v1002, %v1041
    %v1074 = vmul.f32 %v1003, %v1041
    %v1075 = vmul.f32 %v1004, %v1041
    %v1076 = vmul.f32 %v1005, %v1041
    %v1077 = vmul.f32 %v1006, %v1041
    %v1078 = vmul.f32 %v1007, %v1041
    %v1079 = vmul.f32 %v1008, %v1041
    %v1080 = vmul.f32 %v1009, %v1041
    %v1081 = vmul.f32 %v1010, %v1041
    %v1082 = vmul.f32 %v1011, %v1041
    %v1083 = vmul.f32 %v1012, %v1041
    %v1084 = vmul.f32 %v1013, %v1041
    %v1085 = vmul.f32 %v1014, %v1041
    %v1086 = vmul.f32 %v1015, %v1041
    %v1087 = vmul.f32 %v1016, %v1041
    %v1088 = vmul.f32 %v1017, %v1041
    %v1089 = vmul.f32 %v1018, %v1041
    %v1090 = vmul.f32 %v1019, %v1041
    %v1091 = vmul.f32 %v1020, %v1041
    %v1092 = vmul.f32 %v1021, %v1041
    %v1093 = vmul.f32 %v1022, %v1041
    %v1094 = vmul.f32 %v1023, %v1041
    %v1095 = vmul.f32 %v1024, %v1041
    %v1096 = vmul.f32 %v1025, %v1041
    %v1097 = vmul.f32 %v1026, %v1041
    %v1098 = vmul.f32 %v1027, %v1041
    %v1099 = vmul.f32 %v1028, %v1041
    %v1100 = vmul.f32 %v1029, %v1041
    %v1101 = vmul.f32 %v1030, %v1041
    %v1102 = vmul.f32 %v1031, %v1041
    %v1103 = vmul.f32 %v1032, %v1041
    %v1104 = vmul.f32 %v1033, %v1041
    %v1105 = vmul.f32 %v1034, %v1041
    %v1106 = vmul.f32 %v1035, %v1041
    %v1107 = vld [vmem:[%s4] sm:$0x1]
    %v1109 = vlaneseq
    %v1110 = vshrl.u32 %v1109, 7
    %v1111 = vsub.s32 0, %v1110
    %v1112 = vrot.slane %v1107, %v1111
    %v1114 = vadd.f32 %v1043, %v1112
    %v1115 = vadd.f32 %v1044, %v1112
    %v1116 = vadd.f32 %v1045, %v1112
    %v1117 = vadd.f32 %v1046, %v1112
    %v1118 = vadd.f32 %v1047, %v1112
    %v1119 = vadd.f32 %v1048, %v1112
    %v1120 = vadd.f32 %v1049, %v1112
    %v1121 = vadd.f32 %v1050, %v1112
    %v1122 = vadd.f32 %v1051, %v1112
    %v1123 = vadd.f32 %v1052, %v1112
    %v1124 = vadd.f32 %v1053, %v1112
    %v1125 = vadd.f32 %v1054, %v1112
    %v1126 = vadd.f32 %v1055, %v1112
    %v1127 = vadd.f32 %v1056, %v1112
    %v1128 = vadd.f32 %v1057, %v1112
    %v1129 = vadd.f32 %v1058, %v1112
    %v1130 = vadd.f32 %v1059, %v1112
    %v1131 = vadd.f32 %v1060, %v1112
    %v1132 = vadd.f32 %v1061, %v1112
    %v1133 = vadd.f32 %v1062, %v1112
    %v1134 = vadd.f32 %v1063, %v1112
    %v1135 = vadd.f32 %v1064, %v1112
    %v1136 = vadd.f32 %v1065, %v1112
    %v1137 = vadd.f32 %v1066, %v1112
    %v1138 = vadd.f32 %v1067, %v1112
    %v1139 = vadd.f32 %v1068, %v1112
    %v1140 = vadd.f32 %v1069, %v1112
    %v1141 = vadd.f32 %v1070, %v1112
    %v1142 = vadd.f32 %v1071, %v1112
    %v1143 = vadd.f32 %v1072, %v1112
    %v1144 = vadd.f32 %v1073, %v1112
    %v1145 = vadd.f32 %v1074, %v1112
    %v1146 = vadd.f32 %v1075, %v1112
    %v1147 = vadd.f32 %v1076, %v1112
    %v1148 = vadd.f32 %v1077, %v1112
    %v1149 = vadd.f32 %v1078, %v1112
    %v1150 = vadd.f32 %v1079, %v1112
    %v1151 = vadd.f32 %v1080, %v1112
    %v1152 = vadd.f32 %v1081, %v1112
    %v1153 = vadd.f32 %v1082, %v1112
    %v1154 = vadd.f32 %v1083, %v1112
    %v1155 = vadd.f32 %v1084, %v1112
    %v1156 = vadd.f32 %v1085, %v1112
    %v1157 = vadd.f32 %v1086, %v1112
    %v1158 = vadd.f32 %v1087, %v1112
    %v1159 = vadd.f32 %v1088, %v1112
    %v1160 = vadd.f32 %v1089, %v1112
    %v1161 = vadd.f32 %v1090, %v1112
    %v1162 = vadd.f32 %v1091, %v1112
    %v1163 = vadd.f32 %v1092, %v1112
    %v1164 = vadd.f32 %v1093, %v1112
    %v1165 = vadd.f32 %v1094, %v1112
    %v1166 = vadd.f32 %v1095, %v1112
    %v1167 = vadd.f32 %v1096, %v1112
    %v1168 = vadd.f32 %v1097, %v1112
    %v1169 = vadd.f32 %v1098, %v1112
    %v1170 = vadd.f32 %v1099, %v1112
    %v1171 = vadd.f32 %v1100, %v1112
    %v1172 = vadd.f32 %v1101, %v1112
    %v1173 = vadd.f32 %v1102, %v1112
    %v1174 = vadd.f32 %v1103, %v1112
    %v1175 = vadd.f32 %v1104, %v1112
    %v1176 = vadd.f32 %v1105, %v1112
    %v1177 = vadd.f32 %v1106, %v1112
    %v1178 = vadd.f32 %v1114, %v1115
    %v1179 = vadd.f32 %v1178, %v1116
    %v1180 = vadd.f32 %v1179, %v1117
    %v1181 = vadd.f32 %v1180, %v1118
    %v1182 = vadd.f32 %v1181, %v1119
    %v1183 = vadd.f32 %v1182, %v1120
    %v1184 = vadd.f32 %v1183, %v1121
    %v1185 = vadd.f32 %v1184, %v1122
    %v1186 = vadd.f32 %v1185, %v1123
    %v1187 = vadd.f32 %v1186, %v1124
    %v1188 = vadd.f32 %v1187, %v1125
    %v1189 = vadd.f32 %v1188, %v1126
    %v1190 = vadd.f32 %v1189, %v1127
    %v1191 = vadd.f32 %v1190, %v1128
    %v1192 = vadd.f32 %v1191, %v1129
    %v1193 = vadd.f32 %v1192, %v1130
    %v1194 = vadd.f32 %v1193, %v1131
    %v1195 = vadd.f32 %v1194, %v1132
    %v1196 = vadd.f32 %v1195, %v1133
    %v1197 = vadd.f32 %v1196, %v1134
    %v1198 = vadd.f32 %v1197, %v1135
    %v1199 = vadd.f32 %v1198, %v1136
    %v1200 = vadd.f32 %v1199, %v1137
    %v1201 = vadd.f32 %v1200, %v1138
    %v1202 = vadd.f32 %v1201, %v1139
    %v1203 = vadd.f32 %v1202, %v1140
    %v1204 = vadd.f32 %v1203, %v1141
    %v1205 = vadd.f32 %v1204, %v1142
    %v1206 = vadd.f32 %v1205, %v1143
    %v1207 = vadd.f32 %v1206, %v1144
    %v1208 = vadd.f32 %v1207, %v1145
    %v1209 = vrot.slane %v1208, 4
    %v1210 = vadd.f32 %v1208, %v1209
    %v1211 = vrot.slane %v1210, 2
    %v1212 = vadd.f32 %v1210, %v1211
    %v1213 = vrot.slane %v1212, 1
    %v1214 = vadd.f32 %v1212, %v1213
    %v1215 = vrcp.pop 256.0
    %v1216 = vmul.f32 %v1214, %v1215
    %v1217 = vadd.f32 %v1146, %v1147
    %v1218 = vadd.f32 %v1217, %v1148
    %v1219 = vadd.f32 %v1218, %v1149
    %v1220 = vadd.f32 %v1219, %v1150
    %v1221 = vadd.f32 %v1220, %v1151
    %v1222 = vadd.f32 %v1221, %v1152
    %v1223 = vadd.f32 %v1222, %v1153
    %v1224 = vadd.f32 %v1223, %v1154
    %v1225 = vadd.f32 %v1224, %v1155
    %v1226 = vadd.f32 %v1225, %v1156
    %v1227 = vadd.f32 %v1226, %v1157
    %v1228 = vadd.f32 %v1227, %v1158
    %v1229 = vadd.f32 %v1228, %v1159
    %v1230 = vadd.f32 %v1229, %v1160
    %v1231 = vadd.f32 %v1230, %v1161
    %v1232 = vadd.f32 %v1231, %v1162
    %v1233 = vadd.f32 %v1232, %v1163
    %v1234 = vadd.f32 %v1233, %v1164
    %v1235 = vadd.f32 %v1234, %v1165
    %v1236 = vadd.f32 %v1235, %v1166
    %v1237 = vadd.f32 %v1236, %v1167
    %v1238 = vadd.f32 %v1237, %v1168
    %v1239 = vadd.f32 %v1238, %v1169
    %v1240 = vadd.f32 %v1239, %v1170
    %v1241 = vadd.f32 %v1240, %v1171
    %v1242 = vadd.f32 %v1241, %v1172
    %v1243 = vadd.f32 %v1242, %v1173
    %v1244 = vadd.f32 %v1243, %v1174
    %v1245 = vadd.f32 %v1244, %v1175
    %v1246 = vadd.f32 %v1245, %v1176
    %v1247 = vadd.f32 %v1246, %v1177
    %v1248 = vrot.slane %v1247, 4
    %v1249 = vadd.f32 %v1247, %v1248
    %v1250 = vrot.slane %v1249, 2
    %v1251 = vadd.f32 %v1249, %v1250
    %v1252 = vrot.slane %v1251, 1
    %v1253 = vadd.f32 %v1251, %v1252
    %v1254 = vmul.f32 %v1253, %v1215
    %vm1255 = vcmask 1040384
    %v1256 = vsel %vm1255, %v1216, %v1254
    %v1257 = vpack.c.bf16 %v1256, %v1256
    %v1258 = vld [vmem:[%s5] sm:$0xf]
    %v1259 = vld [vmem:[%s5 + $0x4] sm:$0xf]
    %v1260 = vld [vmem:[%s5 + $0x8] sm:$0xf]
    %v1261 = vld [vmem:[%s5 + $0xc] sm:$0xf]
    %v1262 = vld [vmem:[%s5 + $0x10] sm:$0xf]
    %v1263 = vld [vmem:[%s5 + $0x14] sm:$0xf]
    %v1264 = vld [vmem:[%s5 + $0x18] sm:$0xf]
    %v1265 = vld [vmem:[%s5 + $0x1c] sm:$0xf]
    %v1266 = vld [vmem:[%s5 + $0x20] sm:$0xf]
    %v1267 = vld [vmem:[%s5 + $0x24] sm:$0xf]
    %v1268 = vld [vmem:[%s5 + $0x28] sm:$0xf]
    %v1269 = vld [vmem:[%s5 + $0x2c] sm:$0xf]
    %v1270 = vld [vmem:[%s5 + $0x30] sm:$0xf]
    %v1271 = vld [vmem:[%s5 + $0x34] sm:$0xf]
    %v1272 = vld [vmem:[%s5 + $0x38] sm:$0xf]
    %v1273 = vld [vmem:[%s5 + $0x3c] sm:$0xf]
    %v1274 = vld [vmem:[%s6] sm:$0x1]
    %v1276 = vlaneseq
    %v1277 = vshrl.u32 %v1276, 7
    %v1278 = vsub.s32 0, %v1277
    %v1279 = vrot.slane %v1274, %v1278
    %v1297 = vunpack.c.l.b16 %v1258
    %v1298 = vunpack.c.l.b16 %v1259
    %v1299 = vunpack.c.l.b16 %v1260
    %v1300 = vunpack.c.l.b16 %v1261
    %v1301 = vunpack.c.l.b16 %v1262
    %v1302 = vunpack.c.l.b16 %v1263
    %v1303 = vunpack.c.l.b16 %v1264
    %v1304 = vunpack.c.l.b16 %v1265
    %v1305 = vunpack.c.l.b16 %v1266
    %v1306 = vunpack.c.l.b16 %v1267
    %v1307 = vunpack.c.l.b16 %v1268
    %v1308 = vunpack.c.l.b16 %v1269
    %v1309 = vunpack.c.l.b16 %v1270
    %v1310 = vunpack.c.l.b16 %v1271
    %v1311 = vunpack.c.l.b16 %v1272
    %v1312 = vunpack.c.l.b16 %v1273
    %v1313 = vpack.c.b16 %v1298, %v1297
    %v1314 = vpack.c.b16 %v1300, %v1299
    %v1315 = vpack.c.b16 %v1302, %v1301
    %v1316 = vpack.c.b16 %v1304, %v1303
    %v1317 = vpack.c.b16 %v1306, %v1305
    %v1318 = vpack.c.b16 %v1308, %v1307
    %v1319 = vpack.c.b16 %v1310, %v1309
    %v1320 = vpack.c.b16 %v1312, %v1311
    %1329 = vmatprep.subr.bf16.mxu0 0
    %1330 = vmatpush1.bf16.msra.mxu0 %v1313
    %1331 = vmatprep.subr.bf16.mxu0 0
    %1332 = vmatpush1.bf16.msra.mxu0 %v1314
    %1333 = vmatprep.subr.bf16.mxu0 0
    %1334 = vmatpush1.bf16.msra.mxu0 %v1315
    %1335 = vmatprep.subr.bf16.mxu0 0
    %1336 = vmatpush1.bf16.msra.mxu0 %v1316
    %1337 = vmatprep.subr.bf16.mxu0 0
    %1338 = vmatpush1.bf16.msra.mxu0 %v1317
    %1339 = vmatprep.subr.bf16.mxu0 0
    %1340 = vmatpush1.bf16.msra.mxu0 %v1318
    %1341 = vmatprep.subr.bf16.mxu0 0
    %1342 = vmatpush1.bf16.msra.mxu0 %v1319
    %1343 = vmatprep.subr.bf16.mxu0 0
    %1344 = vmatpush1.bf16.msra.mxu0 %v1320
    %1345 = vmatprep.subr.bf16.mxu0 0
    %1346 = vmatpush1.bf16.msra.mxu0 0
    %1347 = vmatprep.subr.bf16.mxu0 0
    %1348 = vmatpush1.bf16.msra.mxu0 0
    %1349 = vmatprep.subr.bf16.mxu0 0
    %1350 = vmatpush1.bf16.msra.mxu0 0
    %1351 = vmatprep.subr.bf16.mxu0 0
    %1352 = vmatpush1.bf16.msra.mxu0 0
    %1353 = vmatprep.subr.bf16.mxu0 0
    %1354 = vmatpush1.bf16.msra.mxu0 0
    %1355 = vmatprep.subr.bf16.mxu0 0
    %1356 = vmatpush1.bf16.msra.mxu0 0
    %1357 = vmatprep.subr.bf16.mxu0 0
    %1358 = vmatpush1.bf16.msra.mxu0 0
    %1359 = vmatprep.subr.bf16.mxu0 0
    %1360 = vmatpush1.bf16.msra.mxu0 0
    %1361 = vmatprep.mubr.bf16.mxu0 0
    %1362 = vmatmul.mubr.bf16.gmra.mrb[0].mxu0 %v1257
    %v1363 = vpop.f32.mrb[0].mxu0
    %v1364 = vadd.f32 %v1279, %v1363
    %v1365 = vpop.f32.mrb[0].mxu0
    %v1366 = vpop.f32.mrb[0].mxu0
    %v1367 = vpop.f32.mrb[0].mxu0
    %1368 = vdwg.mxu0
    %1369 = vst [vmem:[#allocation2] sm:$0x3] %v1364
    // Predicated region
    $region30: #{search_distribution_forward.1} parent=1 // pred_check
      _
    $region31: #{search_distribution_forward.1} parent=1 // pred_check_branch
      %1371 = sbr.rel (0) target = $region33
    $region32: #{search_distribution_forward.1} parent=1 // pred_region
      _
    $region33: #{search_distribution_forward.1} parent=1 // pred_fallthru
      _
    // Predicated region
    $region34: #{search_distribution_forward.1} parent=1 // pred_check
      _
    $region35: #{search_distribution_forward.1} parent=1 // pred_check_branch
      %1373 = sbr.rel (0) target = $region37
    $region36: #{search_distribution_forward.1} parent=1 // pred_region
      %s1375 = ssub.s32 32, 32
      %1376 = vsyncadd [#allocation3], %s1375
      %s1378 = sshll.u32 [#allocation2], 4
      %s1379 = int_to_ptr.vmem [resolvable:$true] %s1378
      %1381 = dma.vmem_to_hbm [thread:$0]  %s1379, 32, %s8, [#allocation3]
    $region37: #{search_distribution_forward.1} parent=1 // pred_fallthru
      _
    // Predicated region
    $region38: #{search_distribution_forward.1} parent=1 // pred_check
      _
    $region39: #{search_distribution_forward.1} parent=1 // pred_check_branch
      %1383 = sbr.rel (0) target = $region41
    $region40: #{search_distribution_forward.1} parent=1 // pred_region
      _
    $region41: #{search_distribution_forward.1} parent=1 // pred_fallthru
      _
    // Predicated region
    $region42: #{search_distribution_forward.1} parent=1 // pred_check
      _
    $region43: #{search_distribution_forward.1} parent=1 // pred_check_branch
      %1385 = sbr.rel (0) target = $region45
    $region44: #{search_distribution_forward.1} parent=1 // pred_region
      %1386 = dma.done [#allocation3], 32
    $region45: #{search_distribution_forward.1} parent=1 // pred_fallthru
      _
    %1387 = vsyncpa [#allocation3], 1

</llo_original>
